<compile_context>
chip_gen: v5e
topology: v5e:2x2
jax: 0.10.0
libtpu: 0.0.40
codegen_flags: <defaults>
</compile_context>

<pallas_src>
import functools
import math

import jax
import jax.numpy as jnp
from jax.experimental import pallas as pl
from jax.experimental.pallas import tpu as pltpu

LANE = 128  # TPU vreg lane width


def _round_up(x, m):
    return (x + m - 1) // m * m


def _actor_kernel(obs_ref, w1_ref, b1_ref, w2_ref, b2_ref, w3_ref, b3_ref,
                  out_ref, *, h1_dim, h2_dim, dim_act):
    """One batch tile: (tb, dim_obs) -> (tb, dim_act)."""

    def lrelu(x):
        return jnp.where(x > 0, x, 0.01 * x)

    x = obs_ref[...]
    # Layer 1: (tb, dim_obs) @ (dim_obs, 128)   [output lanes padded to 128]
    h1 = jnp.dot(x, w1_ref[...], preferred_element_type=jnp.float32) + b1_ref[...]
    h1 = lrelu(h1)
    # Layer 2: contract only the real 64 hidden features (no zero-padded K).
    h2 = jnp.dot(h1[:, :h1_dim], w2_ref[...],
                 preferred_element_type=jnp.float32) + b2_ref[...]
    h2 = lrelu(h2)
    # Layer 3: contract only the real 32 hidden features.
    h3 = jnp.dot(h2[:, :h2_dim], w3_ref[...],
                 preferred_element_type=jnp.float32) + b3_ref[...]
    # Store only the real action columns (lane-masked store; cheap).
    out_ref[...] = jnp.tanh(h3[:, :dim_act]).astype(out_ref.dtype)


def pad_actor_params(params):
    """Pad only the OUTPUT feature dim of each layer to 128 lanes, once."""
    w1, b1, w2, b2, w3, b3 = params
    h1_dim, h2_dim, dim_act = w1.shape[1], w2.shape[1], w3.shape[1]
    h1p = _round_up(h1_dim, LANE)   # 64 -> 128
    h2p = _round_up(h2_dim, LANE)   # 32 -> 128
    ap = _round_up(dim_act, LANE)   # e.g. 4 -> 128

    w1p = jnp.pad(w1, ((0, 0), (0, h1p - h1_dim)))
    b1p = jnp.pad(b1, ((0, 0), (0, h1p - h1_dim)))
    w2p = jnp.pad(w2, ((0, 0), (0, h2p - h2_dim)))   # K dim stays 64
    b2p = jnp.pad(b2, ((0, 0), (0, h2p - h2_dim)))
    w3p = jnp.pad(w3, ((0, 0), (0, ap - dim_act)))   # K dim stays 32
    b3p = jnp.pad(b3, ((0, 0), (0, ap - dim_act)))
    return (w1p, b1p, w2p, b2p, w3p, b3p), (h1_dim, h2_dim, dim_act)


def actor_forward(obs, padded_params, dims, *, tile_b=4096):
    """obs: (batch, dim_obs) f32 -> (batch, dim_actions) f32."""
    w1p, b1p, w2p, b2p, w3p, b3p = padded_params
    h1_dim, h2_dim, dim_act = dims
    batch, dim_obs = obs.shape
    h1p, h2p, ap = w1p.shape[1], w2p.shape[1], w3p.shape[1]

    # Batch tile: multiple of 8, capped by tile_b, and clamped so moderate
    # batches still yield >= 2 grid steps (both v7x TensorCores busy).
    tb = min(tile_b, _round_up(pl.cdiv(batch, 2), 8))
    tb = max(min(tb, _round_up(batch, 8)), 8)
    grid = (pl.cdiv(batch, tb),)  # ragged final block handled by Pallas masking

    kernel = functools.partial(_actor_kernel, h1_dim=h1_dim, h2_dim=h2_dim,
                               dim_act=dim_act)

    return pl.pallas_call(
        kernel,
        out_shape=jax.ShapeDtypeStruct((batch, dim_act), jnp.float32),
        grid=grid,
        in_specs=[
            pl.BlockSpec((tb, dim_obs), lambda i: (i, 0)),     # obs (streamed)
            pl.BlockSpec((dim_obs, h1p), lambda i: (0, 0)),    # w1 (resident)
            pl.BlockSpec((1, h1p), lambda i: (0, 0)),          # b1
            pl.BlockSpec((h1_dim, h2p), lambda i: (0, 0)),     # w2 (K=64 unpadded)
            pl.BlockSpec((1, h2p), lambda i: (0, 0)),          # b2
            pl.BlockSpec((h2_dim, ap), lambda i: (0, 0)),      # w3 (K=32 unpadded)
            pl.BlockSpec((1, ap), lambda i: (0, 0)),           # b3
        ],
        out_specs=pl.BlockSpec((tb, dim_act), lambda i: (i, 0)),  # unpadded output
        compiler_params=pltpu.CompilerParams(
            dimension_semantics=("parallel",),
        ),
    )(obs, w1p, b1p, w2p, b2p, w3p, b3p)


def init_actor_params(key, dim_obs, dim_actions):
    """Deterministic init mimicking nn.Linear default + reset_params() gains."""
    gain_lrelu = math.sqrt(2.0 / (1.0 + 0.01 ** 2))   # calculate_gain('leaky_relu')
    gain_tanh = 5.0 / 3.0                             # calculate_gain('tanh')

    def linear(k, fan_in, fan_out, gain):
        kw, kb = jax.random.split(k)
        bound = 1.0 / math.sqrt(fan_in)
        # stored as (in, out); bias as (1, out) for clean broadcasting on TPU
        w = jax.random.uniform(kw, (fan_in, fan_out), jnp.float32, -bound, bound)
        b = jax.random.uniform(kb, (1, fan_out), jnp.float32, -bound, bound)
        return w * gain, b   # gain applied to weights only (as in reset_params)

    k1, k2, k3 = jax.random.split(key, 3)
    w1, b1 = linear(k1, dim_obs, 64, gain_lrelu)
    w2, b2 = linear(k2, 64, 32, gain_lrelu)
    w3, b3 = linear(k3, 32, dim_actions, gain_tanh)
    return (w1, b1, w2, b2, w3, b3)


def actor_ref(obs, params):
    """Pure-JAX reference for correctness checking."""
    w1, b1, w2, b2, w3, b3 = params
    lrelu = lambda x: jnp.where(x > 0, x, 0.01 * x)
    x = lrelu(obs @ w1 + b1)
    x = lrelu(x @ w2 + b2)
    return jnp.tanh(x @ w3 + b3)


if __name__ == "__main__":
    key = jax.random.PRNGKey(0)
    k_obs, k_obs2, k_params = jax.random.split(key, 3)

    dim_obs, dim_actions = 16, 4
    params = init_actor_params(k_params, dim_obs, dim_actions)
    padded_params, dims = pad_actor_params(params)   # padded once, reused

    # Small MADDPG-style batch (single grid step).
    batch = 8
    obs = jax.random.normal(k_obs, (batch, dim_obs), jnp.float32)
    out = jax.block_until_ready(actor_forward(obs, padded_params, dims))
    ref = actor_ref(obs, params)
    assert out.shape == (batch, dim_actions)
    assert jnp.allclose(out, ref, atol=1e-5, rtol=1e-5)

    # Larger, non-multiple batch exercising multiple grid steps and the
    # ragged (masked) final block — no batch padding, no post-slice copy.
    batch2 = 300
    obs2 = jax.random.normal(k_obs2, (batch2, dim_obs), jnp.float32)
    out2 = jax.block_until_ready(
        actor_forward(obs2, padded_params, dims, tile_b=128))
    ref2 = actor_ref(obs2, params)
    assert out2.shape == (batch2, dim_actions)
    assert jnp.allclose(out2, ref2, atol=1e-5, rtol=1e-5)

    print("KERNEL_OK")
</pallas_src>

<mosaic_0001>
module attributes {stable_mosaic.version = 11 : i64} {
  func.func @_actor_kernel(%arg0: i32, %arg1: memref<8x16xf32, #tpu.memory_space<vmem>>, %arg2: memref<16x128xf32, #tpu.memory_space<vmem>>, %arg3: memref<1x128xf32, #tpu.memory_space<vmem>>, %arg4: memref<64x128xf32, #tpu.memory_space<vmem>>, %arg5: memref<1x128xf32, #tpu.memory_space<vmem>>, %arg6: memref<32x128xf32, #tpu.memory_space<vmem>>, %arg7: memref<1x128xf32, #tpu.memory_space<vmem>>, %arg8: memref<8x4xf32, #tpu.memory_space<vmem>>) attributes {dimension_semantics = [#tpu.dimension_semantics<parallel>], iteration_bounds = array<i64: 1>, scalar_prefetch = 0 : i64, scratch_operands = 0 : i64, tpu.core_type = #tpu.core_type<tc>, window_params = [{transform_indices = @transform_0, window_bounds = array<i64: 8, 16>}, {pipeline_mode = #tpu.pipeline_mode<synchronous>, transform_indices = @transform_1, window_bounds = array<i64: 16, 128>}, {pipeline_mode = #tpu.pipeline_mode<synchronous>, transform_indices = @transform_2, window_bounds = array<i64: 1, 128>}, {pipeline_mode = #tpu.pipeline_mode<synchronous>, transform_indices = @transform_3, window_bounds = array<i64: 64, 128>}, {pipeline_mode = #tpu.pipeline_mode<synchronous>, transform_indices = @transform_4, window_bounds = array<i64: 1, 128>}, {pipeline_mode = #tpu.pipeline_mode<synchronous>, transform_indices = @transform_5, window_bounds = array<i64: 32, 128>}, {pipeline_mode = #tpu.pipeline_mode<synchronous>, transform_indices = @transform_6, window_bounds = array<i64: 1, 128>}, {transform_indices = @transform_7, window_bounds = array<i64: 8, 4>}]} {
    %c0 = arith.constant 0 : index
    %c0_0 = arith.constant 0 : index
    %0 = vector.load %arg1[%c0, %c0_0] : memref<8x16xf32, #tpu.memory_space<vmem>>, vector<8x16xf32>
    %c0_1 = arith.constant 0 : index
    %c0_2 = arith.constant 0 : index
    %1 = vector.load %arg2[%c0_1, %c0_2] : memref<16x128xf32, #tpu.memory_space<vmem>>, vector<16x128xf32>
    %cst = arith.constant dense<0.000000e+00> : vector<8x128xf32>
    %2 = tpu.matmul %0, %1, %cst {dimension_numbers = #tpu.dot_dimension_numbers<[1], [0], [0], [1], [0, 0, 1, 1], [], []>} : vector<8x16xf32>, vector<16x128xf32>, vector<8x128xf32> -> vector<8x128xf32>
    %c0_3 = arith.constant 0 : index
    %c0_4 = arith.constant 0 : index
    %3 = vector.load %arg3[%c0_3, %c0_4] : memref<1x128xf32, #tpu.memory_space<vmem>>, vector<1x128xf32>
    %4 = vector.broadcast %3 : vector<1x128xf32> to vector<8x128xf32>
    %5 = arith.addf %2, %4 : vector<8x128xf32>
    %cst_5 = arith.constant 0.000000e+00 : f32
    %6 = vector.broadcast %cst_5 : f32 to vector<8x128xf32>
    %7 = arith.cmpf ogt, %5, %6 : vector<8x128xf32>
    %cst_6 = arith.constant 0.00999999977 : f32
    %8 = vector.broadcast %cst_6 : f32 to vector<8x128xf32>
    %9 = arith.mulf %8, %5 : vector<8x128xf32>
    %10 = arith.select %7, %5, %9 : vector<8x128xi1>, vector<8x128xf32>
    %11 = vector.extract_strided_slice %10 {offsets = [0, 0], sizes = [8, 64], strides = [1, 1]} : vector<8x128xf32> to vector<8x64xf32>
    %c0_7 = arith.constant 0 : index
    %c0_8 = arith.constant 0 : index
    %12 = vector.load %arg4[%c0_7, %c0_8] : memref<64x128xf32, #tpu.memory_space<vmem>>, vector<64x128xf32>
    %cst_9 = arith.constant dense<0.000000e+00> : vector<8x128xf32>
    %13 = tpu.matmul %11, %12, %cst_9 {dimension_numbers = #tpu.dot_dimension_numbers<[1], [0], [0], [1], [0, 0, 1, 1], [], []>} : vector<8x64xf32>, vector<64x128xf32>, vector<8x128xf32> -> vector<8x128xf32>
    %c0_10 = arith.constant 0 : index
    %c0_11 = arith.constant 0 : index
    %14 = vector.load %arg5[%c0_10, %c0_11] : memref<1x128xf32, #tpu.memory_space<vmem>>, vector<1x128xf32>
    %15 = vector.broadcast %14 : vector<1x128xf32> to vector<8x128xf32>
    %16 = arith.addf %13, %15 : vector<8x128xf32>
    %cst_12 = arith.constant 0.000000e+00 : f32
    %17 = vector.broadcast %cst_12 : f32 to vector<8x128xf32>
    %18 = arith.cmpf ogt, %16, %17 : vector<8x128xf32>
    %cst_13 = arith.constant 0.00999999977 : f32
    %19 = vector.broadcast %cst_13 : f32 to vector<8x128xf32>
    %20 = arith.mulf %19, %16 : vector<8x128xf32>
    %21 = arith.select %18, %16, %20 : vector<8x128xi1>, vector<8x128xf32>
    %22 = vector.extract_strided_slice %21 {offsets = [0, 0], sizes = [8, 32], strides = [1, 1]} : vector<8x128xf32> to vector<8x32xf32>
    %c0_14 = arith.constant 0 : index
    %c0_15 = arith.constant 0 : index
    %23 = vector.load %arg6[%c0_14, %c0_15] : memref<32x128xf32, #tpu.memory_space<vmem>>, vector<32x128xf32>
    %cst_16 = arith.constant dense<0.000000e+00> : vector<8x128xf32>
    %24 = tpu.matmul %22, %23, %cst_16 {dimension_numbers = #tpu.dot_dimension_numbers<[1], [0], [0], [1], [0, 0, 1, 1], [], []>} : vector<8x32xf32>, vector<32x128xf32>, vector<8x128xf32> -> vector<8x128xf32>
    %c0_17 = arith.constant 0 : index
    %c0_18 = arith.constant 0 : index
    %25 = vector.load %arg7[%c0_17, %c0_18] : memref<1x128xf32, #tpu.memory_space<vmem>>, vector<1x128xf32>
    %26 = vector.broadcast %25 : vector<1x128xf32> to vector<8x128xf32>
    %27 = arith.addf %24, %26 : vector<8x128xf32>
    %28 = vector.extract_strided_slice %27 {offsets = [0, 0], sizes = [8, 4], strides = [1, 1]} : vector<8x128xf32> to vector<8x4xf32>
    %29 = math.tanh %28 : vector<8x4xf32>
    %c0_19 = arith.constant 0 : index
    %c0_20 = arith.constant 0 : index
    %30 = vector.load %arg8[%c0_19, %c0_20] : memref<8x4xf32, #tpu.memory_space<vmem>>, vector<8x4xf32>
    tpu.vector_store %arg8[%c0_19, %c0_20], %29 {strides = array<i32>} : memref<8x4xf32, #tpu.memory_space<vmem>>, vector<8x4xf32>,
    return
  }
  func.func @transform_0(%arg0: i32) -> (i32, i32) {
    %c0_i32 = arith.constant 0 : i32
    %c0_i32_0 = arith.constant 0 : i32
    return %arg0, %c0_i32 : i32, i32
  }
  func.func @transform_1(%arg0: i32) -> (i32, i32) {
    %c0_i32 = arith.constant 0 : i32
    %c0_i32_0 = arith.constant 0 : i32
    %c0_i32_1 = arith.constant 0 : i32
    return %c0_i32, %c0_i32_0 : i32, i32
  }
  func.func @transform_2(%arg0: i32) -> (i32, i32) {
    %c0_i32 = arith.constant 0 : i32
    %c0_i32_0 = arith.constant 0 : i32
    %c0_i32_1 = arith.constant 0 : i32
    return %c0_i32, %c0_i32_0 : i32, i32
  }
  func.func @transform_3(%arg0: i32) -> (i32, i32) {
    %c0_i32 = arith.constant 0 : i32
    %c0_i32_0 = arith.constant 0 : i32
    %c0_i32_1 = arith.constant 0 : i32
    return %c0_i32, %c0_i32_0 : i32, i32
  }
  func.func @transform_4(%arg0: i32) -> (i32, i32) {
    %c0_i32 = arith.constant 0 : i32
    %c0_i32_0 = arith.constant 0 : i32
    %c0_i32_1 = arith.constant 0 : i32
    return %c0_i32, %c0_i32_0 : i32, i32
  }
  func.func @transform_5(%arg0: i32) -> (i32, i32) {
    %c0_i32 = arith.constant 0 : i32
    %c0_i32_0 = arith.constant 0 : i32
    %c0_i32_1 = arith.constant 0 : i32
    return %c0_i32, %c0_i32_0 : i32, i32
  }
  func.func @transform_6(%arg0: i32) -> (i32, i32) {
    %c0_i32 = arith.constant 0 : i32
    %c0_i32_0 = arith.constant 0 : i32
    %c0_i32_1 = arith.constant 0 : i32
    return %c0_i32, %c0_i32_0 : i32, i32
  }
  func.func @transform_7(%arg0: i32) -> (i32, i32) {
    %c0_i32 = arith.constant 0 : i32
    %c0_i32_0 = arith.constant 0 : i32
    return %arg0, %c0_i32 : i32, i32
  }
}

</mosaic_0001>

<llo_original>
// kernel: tpu_custom_call.1
$region0: #{tpu_custom_call.1}
  #allocation0 [shape = 'u32[]', space=smem, size = 0x4, offset = 0x4, fixed_abs, tag = 'smem constant byte address 0x4 - core index']
  #allocation1 [shape = 'u32[72,128]{1,0:T(1,128)}', space=vmem, size = 0x9000, scoped, tag = 'internal scratch']
  %s0 = inlined_call_operand.hbm [shape: f32[8,16], index: 0, kind: input, shape index: {}]
  %s1 = inlined_call_operand.hbm [shape: f32[16,128], index: 1, kind: input, shape index: {}]
  %s2 = inlined_call_operand.vmem [shape: f32[1,128], index: 2, kind: input, shape index: {}]
  %s3 = inlined_call_operand.hbm [shape: f32[64,128], index: 3, kind: input, shape index: {}]
  %s4 = inlined_call_operand.vmem [shape: f32[1,128], index: 4, kind: input, shape index: {}]
  %s5 = inlined_call_operand.hbm [shape: f32[32,128], index: 5, kind: input, shape index: {}]
  %s6 = inlined_call_operand.vmem [shape: f32[1,128], index: 6, kind: input, shape index: {}]
  %s7 = inlined_call_operand.vmem [shape: f32[8,4], index: 7, kind: output, shape index: {}]
  %s8 = sld [smem:[#allocation0]]
  $region54: #{tpu_custom_call.1} parent=0
    _
  %s10 = ssub.s32 1, %s8
  %s11 = scalar_select 0, %s10, %s8
  $region1: #{tpu_custom_call.1} parent=0
    #allocation2 [shape = 'u8[4096]{0}', space=vmem, size = 0x1000, scoped, tag = 'input window, operand 0, single buffered']
    #allocation3 [shape = 's32[1]{0}', space=sflag, size = 0x4, scoped, tag = 'scoped memory for tpu_custom_call.1']
    #allocation4 [shape = 'u8[8192]{0}', space=vmem, size = 0x2000, scoped, tag = 'input window, operand 1, single buffered']
    #allocation5 [shape = 's32[1]{0}', space=sflag, size = 0x4, scoped, tag = 'scoped memory for tpu_custom_call.1']
    #allocation6 [shape = 'u8[32768]{0}', space=vmem, size = 0x8000, scoped, tag = 'input window, operand 3, single buffered']
    #allocation7 [shape = 'u8[16384]{0}', space=vmem, size = 0x4000, scoped, tag = 'input window, operand 5, single buffered']
    #allocation8 [shape = 's32[1]{0}', space=sflag, size = 0x4, scoped, tag = 'scoped memory for tpu_custom_call.1']
    %12 = vsyncpa [#allocation3], 0
    %13 = vsyncpa [#allocation5], 0
    %14 = vsyncpa [#allocation8], 0
    // Predicated region
    $region2: #{tpu_custom_call.1} parent=1 // pred_check
      _
    $region3: #{tpu_custom_call.1} parent=1 // pred_check_branch
      %16 = sbr.rel (0) target = $region5
    $region4: #{tpu_custom_call.1} parent=1 // pred_region
      %18 = vsyncadd [#allocation3], 0
      %s20 = sshll.u32 %s0, 4
      %s21 = int_to_ptr.hbm [resolvable:$true] %s20
      %s22 = sshll.u32 [#allocation2], 4
      %s23 = int_to_ptr.vmem [resolvable:$true] %s22
      %25 = dma.hbm_to_vmem [thread:$0]  %s21, 128, %s23, [#allocation3]
    $region5: #{tpu_custom_call.1} parent=1 // pred_fallthru
      _
    // Predicated region
    $region6: #{tpu_custom_call.1} parent=1 // pred_check
      _
    $region7: #{tpu_custom_call.1} parent=1 // pred_check_branch
      %27 = sbr.rel (0) target = $region9
    $region8: #{tpu_custom_call.1} parent=1 // pred_region
      %29 = vsyncadd [#allocation5], 0
      %s30 = sshll.u32 %s1, 4
      %s31 = int_to_ptr.hbm [resolvable:$true] %s30
      %s32 = sshll.u32 [#allocation4], 4
      %s33 = int_to_ptr.vmem [resolvable:$true] %s32
      %38 = dma.hbm_to_vmem [thread:$0]  %s31, 256, %s33, [#allocation5], 128, 128, 8
    $region9: #{tpu_custom_call.1} parent=1 // pred_fallthru
      _
    // Predicated region
    $region10: #{tpu_custom_call.1} parent=1 // pred_check
      _
    $region11: #{tpu_custom_call.1} parent=1 // pred_check_branch
      %40 = sbr.rel (0) target = $region13
    $region12: #{tpu_custom_call.1} parent=1 // pred_region
      _
    $region13: #{tpu_custom_call.1} parent=1 // pred_fallthru
      _
    // Predicated region
    $region14: #{tpu_custom_call.1} parent=1 // pred_check
      _
    $region15: #{tpu_custom_call.1} parent=1 // pred_check_branch
      %42 = sbr.rel (0) target = $region17
    $region16: #{tpu_custom_call.1} parent=1 // pred_region
      %44 = vsyncadd [#allocation5], 0
      %s45 = sshll.u32 %s3, 4
      %s46 = int_to_ptr.hbm [resolvable:$true] %s45
      %s47 = sshll.u32 [#allocation6], 4
      %s48 = int_to_ptr.vmem [resolvable:$true] %s47
      %53 = dma.hbm_to_vmem [thread:$0]  %s46, 1024, %s48, [#allocation5], 128, 128, 8
    $region17: #{tpu_custom_call.1} parent=1 // pred_fallthru
      _
    // Predicated region
    $region18: #{tpu_custom_call.1} parent=1 // pred_check
      _
    $region19: #{tpu_custom_call.1} parent=1 // pred_check_branch
      %55 = sbr.rel (0) target = $region21
    $region20: #{tpu_custom_call.1} parent=1 // pred_region
      _
    $region21: #{tpu_custom_call.1} parent=1 // pred_fallthru
      _
    // Predicated region
    $region22: #{tpu_custom_call.1} parent=1 // pred_check
      _
    $region23: #{tpu_custom_call.1} parent=1 // pred_check_branch
      %57 = sbr.rel (0) target = $region25
    $region24: #{tpu_custom_call.1} parent=1 // pred_region
      %59 = vsyncadd [#allocation8], 0
      %s60 = sshll.u32 %s5, 4
      %s61 = int_to_ptr.hbm [resolvable:$true] %s60
      %s62 = sshll.u32 [#allocation7], 4
      %s63 = int_to_ptr.vmem [resolvable:$true] %s62
      %68 = dma.hbm_to_vmem [thread:$0]  %s61, 512, %s63, [#allocation8], 128, 128, 8
    $region25: #{tpu_custom_call.1} parent=1 // pred_fallthru
      _
    // Predicated region
    $region26: #{tpu_custom_call.1} parent=1 // pred_check
      _
    $region27: #{tpu_custom_call.1} parent=1 // pred_check_branch
      %70 = sbr.rel (0) target = $region29
    $region28: #{tpu_custom_call.1} parent=1 // pred_region
      _
    $region29: #{tpu_custom_call.1} parent=1 // pred_fallthru
      _
    // Predicated region
    $region30: #{tpu_custom_call.1} parent=1 // pred_check
      _
    $region31: #{tpu_custom_call.1} parent=1 // pred_check_branch
      %72 = sbr.rel (0) target = $region33
    $region32: #{tpu_custom_call.1} parent=1 // pred_region
      %74 = dma.done [#allocation3], 128
    $region33: #{tpu_custom_call.1} parent=1 // pred_fallthru
      _
    // Predicated region
    $region34: #{tpu_custom_call.1} parent=1 // pred_check
      _
    $region35: #{tpu_custom_call.1} parent=1 // pred_check_branch
      %76 = sbr.rel (0) target = $region37
    $region36: #{tpu_custom_call.1} parent=1 // pred_region
      %78 = dma.done [#allocation5], 256
    $region37: #{tpu_custom_call.1} parent=1 // pred_fallthru
      _
    // Predicated region
    $region38: #{tpu_custom_call.1} parent=1 // pred_check
      _
    $region39: #{tpu_custom_call.1} parent=1 // pred_check_branch
      %80 = sbr.rel (0) target = $region41
    $region40: #{tpu_custom_call.1} parent=1 // pred_region
      %82 = dma.done [#allocation5], 1024
    $region41: #{tpu_custom_call.1} parent=1 // pred_fallthru
      _
    // Predicated region
    $region42: #{tpu_custom_call.1} parent=1 // pred_check
      _
    $region43: #{tpu_custom_call.1} parent=1 // pred_check_branch
      %84 = sbr.rel (0) target = $region45
    $region44: #{tpu_custom_call.1} parent=1 // pred_region
      %86 = dma.done [#allocation8], 512
    $region45: #{tpu_custom_call.1} parent=1 // pred_fallthru
      _
    %v87 = vld [vmem:[#allocation2] sm:$0xff]
    %v88 = vld [vmem:[#allocation4] sm:$0xff]
    %v89 = vld [vmem:[#allocation4 + $0x8] sm:$0xff]
    %v90 = vld [vmem:[%s2] sm:$0x1]
    %v92 = vperm.slane %v90, 0
    %vm94 = vcmask 130048
    %v96 = vsel %vm94, %v87, 0
    %98 = vmatpush.msra.mxu0 0.0
    %99 = vmatpush.msra.mxu0 0.0
    %100 = vmatpush.msra.mxu0 0.0
    %101 = vmatpush.msra.mxu0 0.0
    %102 = vmatpush.msra.mxu0 0.0
    %103 = vmatpush.msra.mxu0 0.0
    %104 = vmatpush.msra.mxu0 0.0
    %105 = vmatpush.msra.mxu0 0.0
    %106 = vmatpush.msra.mxu0 0.0
    %107 = vmatpush.msra.mxu0 0.0
    %108 = vmatpush.msra.mxu0 0.0
    %109 = vmatpush.msra.mxu0 0.0
    %110 = vmatpush.msra.mxu0 0.0
    %111 = vmatpush.msra.mxu0 0.0
    %112 = vmatpush.msra.mxu0 %v89
    %113 = vmatpush.msra.mxu0 %v88
    %114 = vmatmul.f32.gmra.mxu0 %v96
    %v115 = vpop.f32.mrf.mxu0
    %v116 = vadd.f32 %v92, %v115
    %117 = vdwg.mxu0
    %vm118 = vcmp.gt.f32.partialorder %v116, 0.0
    %v119 = vmul.f32 %v116, 0.01
    %v120 = vsel %vm118, %v116, %v119
    %v121 = vld [vmem:[#allocation6] sm:$0xff]
    %v122 = vld [vmem:[#allocation6 + $0x8] sm:$0xff]
    %v123 = vld [vmem:[#allocation6 + $0x10] sm:$0xff]
    %v124 = vld [vmem:[#allocation6 + $0x18] sm:$0xff]
    %v125 = vld [vmem:[#allocation6 + $0x20] sm:$0xff]
    %v126 = vld [vmem:[#allocation6 + $0x28] sm:$0xff]
    %v127 = vld [vmem:[#allocation6 + $0x30] sm:$0xff]
    %v128 = vld [vmem:[#allocation6 + $0x38] sm:$0xff]
    %v129 = vld [vmem:[%s4] sm:$0x1]
    %v131 = vperm.slane %v129, 0
    %vm133 = vcmask 523264
    %v135 = vsel %vm133, %v120, 0
    %137 = vmatpush.msra.mxu0 0.0
    %138 = vmatpush.msra.mxu0 0.0
    %139 = vmatpush.msra.mxu0 0.0
    %140 = vmatpush.msra.mxu0 0.0
    %141 = vmatpush.msra.mxu0 0.0
    %142 = vmatpush.msra.mxu0 0.0
    %143 = vmatpush.msra.mxu0 0.0
    %144 = vmatpush.msra.mxu0 0.0
    %145 = vmatpush.msra.mxu0 %v128
    %146 = vmatpush.msra.mxu0 %v127
    %147 = vmatpush.msra.mxu0 %v126
    %148 = vmatpush.msra.mxu0 %v125
    %149 = vmatpush.msra.mxu0 %v124
    %150 = vmatpush.msra.mxu0 %v123
    %151 = vmatpush.msra.mxu0 %v122
    %152 = vmatpush.msra.mxu0 %v121
    %153 = vmatmul.f32.gmra.mxu0 %v135
    %v154 = vpop.f32.mrf.mxu0
    %v155 = vadd.f32 %v131, %v154
    %156 = vdwg.mxu0
    %vm157 = vcmp.gt.f32.partialorder %v155, 0.0
    %v158 = vmul.f32 %v155, 0.01
    %v159 = vsel %vm157, %v155, %v158
    %v160 = vld [vmem:[#allocation7] sm:$0xff]
    %v161 = vld [vmem:[#allocation7 + $0x8] sm:$0xff]
    %v162 = vld [vmem:[#allocation7 + $0x10] sm:$0xff]
    %v163 = vld [vmem:[#allocation7 + $0x18] sm:$0xff]
    %v164 = vld [vmem:[%s6] sm:$0x1]
    %v166 = vperm.slane %v164, 0
    %vm168 = vcmask 261120
    %v170 = vsel %vm168, %v159, 0
    %172 = vmatpush.msra.mxu0 0.0
    %173 = vmatpush.msra.mxu0 0.0
    %174 = vmatpush.msra.mxu0 0.0
    %175 = vmatpush.msra.mxu0 0.0
    %176 = vmatpush.msra.mxu0 0.0
    %177 = vmatpush.msra.mxu0 0.0
    %178 = vmatpush.msra.mxu0 0.0
    %179 = vmatpush.msra.mxu0 0.0
    %180 = vmatpush.msra.mxu0 0.0
    %181 = vmatpush.msra.mxu0 0.0
    %182 = vmatpush.msra.mxu0 0.0
    %183 = vmatpush.msra.mxu0 0.0
    %184 = vmatpush.msra.mxu0 %v163
    %185 = vmatpush.msra.mxu0 %v162
    %186 = vmatpush.msra.mxu0 %v161
    %187 = vmatpush.msra.mxu0 %v160
    %188 = vmatmul.f32.gmra.mxu0 %v170
    %v189 = vpop.f32.mrf.mxu0
    %v190 = vadd.f32 %v166, %v189
    %191 = vdwg.mxu0
    %v192 = vtanh.pop %v190
    %vm193 = vcmask 31744
    %194 = vst.msk [vmem:[%s7] sm:$0xff] %vm193, %v192
    // Predicated region
    $region46: #{tpu_custom_call.1} parent=1 // pred_check
      _
    $region47: #{tpu_custom_call.1} parent=1 // pred_check_branch
      %196 = sbr.rel (0) target = $region49
    $region48: #{tpu_custom_call.1} parent=1 // pred_region
      _
    $region49: #{tpu_custom_call.1} parent=1 // pred_fallthru
      _
    // Predicated region
    $region50: #{tpu_custom_call.1} parent=1 // pred_check
      _
    $region51: #{tpu_custom_call.1} parent=1 // pred_check_branch
      %198 = sbr.rel (0) target = $region53
    $region52: #{tpu_custom_call.1} parent=1 // pred_region
      _
    $region53: #{tpu_custom_call.1} parent=1 // pred_fallthru
      _
    %199 = vsyncpa [#allocation3], 1
    %200 = vsyncpa [#allocation5], 1
    %201 = vsyncpa [#allocation8], 1

</llo_original>
